<compile_context>
chip_gen: v7x
topology: tpu7x:2x2x1
jax: 0.10.0
libtpu: 0.0.40
codegen_flags: <defaults>
</compile_context>

<pallas_src>
import jax
import jax.numpy as jnp
from jax.experimental import pallas as pl
from jax.experimental.pallas import tpu as pltpu

LANE = 128
NEG_INF = -1e30


def _round_up(n, m):
    return ((n + m - 1) // m) * m


def _pad2(a, rows, cols, dtype, fill=0.0):
    a = jnp.pad(a, ((0, rows - a.shape[0]), (0, cols - a.shape[1])),
                constant_values=fill)
    return a.astype(dtype)


def _chip_traits():
    """(num_tensorcores_per_device, is_v5e, is_v7x) from the local device kind."""
    kind = ""
    try:
        kind = jax.devices()[0].device_kind.lower()
    except Exception:
        pass
    is_v7x = "v7" in kind
    # Megacore chips expose 2 TensorCores behind one device: v4, v5p, v7x.
    multi_tc = is_v7x or ("v4" in kind) or ("v5p" in kind)
    is_v5e = ("v5e" in kind) or ("v5 lite" in kind) or ("v5litepod" in kind)
    return (2 if multi_tc else 1), is_v5e, is_v7x


# ---------------------------------------------------------------------------
# Kernel: one batch tile -> fc1+ReLU -> fc2+ReLU -> fc3 -> softmax
# ---------------------------------------------------------------------------
def _mlp_softmax_kernel(x_ref, w1_ref, b1_ref, w2_ref, b2_ref, w3_ref, b3_ref,
                        o_ref):
    # f32 -> bf16 cast in-kernel (VPU work, hides under the x DMA).
    x = x_ref[...].astype(jnp.bfloat16)
    # fc1 + ReLU  (bf16 x bf16 -> f32 accumulate on the MXU)
    h = jnp.dot(x, w1_ref[...], preferred_element_type=jnp.float32) + b1_ref[...]
    h = jnp.maximum(h, 0.0).astype(jnp.bfloat16)
    # fc2 + ReLU
    h = jnp.dot(h, w2_ref[...], preferred_element_type=jnp.float32) + b2_ref[...]
    h = jnp.maximum(h, 0.0).astype(jnp.bfloat16)
    # fc3 (lane-padded output columns carry -1e30 baked into b3)
    logits = jnp.dot(h, w3_ref[...], preferred_element_type=jnp.float32) + b3_ref[...]
    # softmax over the last dim (F.softmax default for 2-D input -> dim=1);
    # exp(-1e30 - m) underflows to exactly 0, so padded columns get zero prob.
    m = jnp.max(logits, axis=-1, keepdims=True)
    e = jnp.exp(logits - m)
    denom = jnp.sum(e, axis=-1, keepdims=True)
    o_ref[...] = (e / denom).astype(o_ref.dtype)


# ---------------------------------------------------------------------------
# One-time weight preparation (call once, reuse across forward calls)
# ---------------------------------------------------------------------------
def prepare_params(params):
    """Pad feature dims to 128 lanes and cast weights to bf16, once."""
    in_dim, h1 = params["w1"].shape
    h2 = params["w2"].shape[1]
    out_dim = params["w3"].shape[1]
    h1_p = _round_up(h1, LANE)
    h2_p = _round_up(h2, LANE)
    out_p = _round_up(out_dim, LANE)
    return {
        # w1 keeps its raw K dim so it matches the un-padded f32 x lane width.
        "w1": _pad2(params["w1"], in_dim, h1_p, jnp.bfloat16),
        "b1": _pad2(params["b1"].reshape(1, -1), 1, h1_p, jnp.float32),
        "w2": _pad2(params["w2"], h1_p, h2_p, jnp.bfloat16),
        "b2": _pad2(params["b2"].reshape(1, -1), 1, h2_p, jnp.float32),
        "w3": _pad2(params["w3"], h2_p, out_p, jnp.bfloat16),
        # Softmax mask baked into b3: padded w3 columns are zero and h >= 0,
        # so padded logits == -1e30 and their exp() is exactly 0.
        "b3": _pad2(params["b3"].reshape(1, -1), 1, out_p, jnp.float32,
                    fill=NEG_INF),
        "in_dim": in_dim,
        "out_dim": out_dim,
    }


# ---------------------------------------------------------------------------
# Forward wrapper
# ---------------------------------------------------------------------------
def mnist_predictor_forward(x, prepared, *, bm=None):
    """x: (B, in_dim) float32.  prepared: output of prepare_params()."""
    B, in_dim = x.shape
    assert in_dim == prepared["in_dim"], "x feature dim mismatch"
    out_dim = prepared["out_dim"]
    out_p = prepared["w3"].shape[1]

    num_tc, is_v5e, is_v7x = _chip_traits()

    # Batch tile: one fat tile on single-TC chips; split only where the
    # "parallel" grid axis can actually shard across TensorCores.
    if bm is None:
        cap = 256 if is_v5e else 512       # v5e: avoid spilling onto its lone vst slot
        if num_tc >= 2 and B >= 16:
            bm = _round_up(pl.cdiv(B, num_tc), 8)
        else:
            bm = _round_up(max(B, 1), 8)
        bm = max(8, min(cap, bm))
    bm = _round_up(bm, 8)

    n_tiles = pl.cdiv(B, bm)
    B_p = n_tiles * bm
    # Row padding only (stays f32, no lane pad, no extra HBM pass for casting).
    x_p = x if B_p == B else jnp.pad(x, ((0, B_p - B), (0, 0)))

    # v7x has 64 MiB physical VMEM -> keep the scoped limit conservative there.
    vmem_limit = (48 if is_v7x else 64) * 1024 * 1024

    def run(weight_mode):
        def w_spec(shape):
            if weight_mode is None:
                return pl.BlockSpec(shape, lambda i: (0, 0))
            return pl.BlockSpec(shape, lambda i: (0, 0), pipeline_mode=weight_mode)

        return pl.pallas_call(
            _mlp_softmax_kernel,
            out_shape=jax.ShapeDtypeStruct((B_p, out_p), jnp.float32),
            grid=(n_tiles,),
            in_specs=[
                # x tile streams; last dim == full array dim satisfies (8,128).
                pl.BlockSpec((bm, in_dim), lambda i: (i, 0)),
                w_spec(prepared["w1"].shape),   # resident weights/biases
                w_spec(prepared["b1"].shape),
                w_spec(prepared["w2"].shape),
                w_spec(prepared["b2"].shape),
                w_spec(prepared["w3"].shape),
                w_spec(prepared["b3"].shape),
            ],
            out_specs=pl.BlockSpec((bm, out_p), lambda i: (i, 0)),
            compiler_params=pltpu.CompilerParams(
                dimension_semantics=("parallel",),
                vmem_limit_bytes=vmem_limit,
            ),
        )(x_p, prepared["w1"], prepared["b1"], prepared["w2"], prepared["b2"],
          prepared["w3"], prepared["b3"])

    try:
        # Constant-index weight blocks never re-DMA; single-buffer them to halve
        # resident weight VMEM (matters on v7x once hidden dims grow).
        out_padded = run(pl.Buffered(1))
    except Exception:
        out_padded = run(None)

    # Slice off batch-remainder rows and lane-padded output columns.
    return out_padded[:B, :out_dim]


# ---------------------------------------------------------------------------
# Reference + test harness
# ---------------------------------------------------------------------------
def init_params(key, in_dim, out_dim):
    """PyTorch Linear-style init: U(-1/sqrt(fan_in), 1/sqrt(fan_in))."""
    ks = jax.random.split(key, 6)

    def linear(kw, kb, fan_in, fan_out):
        bound = 1.0 / jnp.sqrt(fan_in)
        w = jax.random.uniform(kw, (fan_in, fan_out), jnp.float32, -bound, bound)
        b = jax.random.uniform(kb, (1, fan_out), jnp.float32, -bound, bound)
        return w, b

    w1, b1 = linear(ks[0], ks[1], in_dim, out_dim)
    w2, b2 = linear(ks[2], ks[3], out_dim, out_dim)
    w3, b3 = linear(ks[4], ks[5], out_dim, out_dim)
    return {"w1": w1, "b1": b1, "w2": w2, "b2": b2, "w3": w3, "b3": b3}


def reference_forward(x, p):
    h = jax.nn.relu(x @ p["w1"] + p["b1"])
    h = jax.nn.relu(h @ p["w2"] + p["b2"])
    logits = h @ p["w3"] + p["b3"]
    return jax.nn.softmax(logits, axis=-1)


def _check(B, in_dim, out_dim, seed):
    key = jax.random.PRNGKey(seed)
    k_x, k_p = jax.random.split(key)
    x = jax.random.normal(k_x, (B, in_dim), dtype=jnp.float32)
    params = init_params(k_p, in_dim, out_dim)
    prepared = prepare_params(params)  # one-time pad/cast, reused across calls

    out = jax.block_until_ready(mnist_predictor_forward(x, prepared))
    ref = jax.block_until_ready(reference_forward(x, params))

    assert out.shape == (B, out_dim), f"bad shape {out.shape}"
    # bf16 matmul inputs -> compare against the f32 reference with loose tol.
    assert jnp.allclose(out, ref, atol=2e-2, rtol=2e-2), "mismatch vs reference"
    # Exact divide + masked padded columns: rows must sum to 1 (padded columns
    # contribute exactly zero probability).
    assert jnp.allclose(jnp.sum(out, axis=-1), 1.0, atol=1e-3), \
        "softmax rows must sum to 1"


if __name__ == "__main__":
    # Small shapes consistent with mnist_predictor(input, output).
    _check(B=8, in_dim=64, out_dim=32, seed=0)
    # Exercises batch-remainder padding and (on megacore chips) a 2-step grid.
    _check(B=20, in_dim=64, out_dim=32, seed=0)
    print("KERNEL_OK")
</pallas_src>

<mosaic_0001>
module attributes {stable_mosaic.version = 11 : i64} {
  func.func @_mlp_softmax_kernel(%arg0: i32, %arg1: memref<8x64xf32, #tpu.memory_space<vmem>>, %arg2: memref<64x128xbf16, #tpu.memory_space<vmem>>, %arg3: memref<1x128xf32, #tpu.memory_space<vmem>>, %arg4: memref<128x128xbf16, #tpu.memory_space<vmem>>, %arg5: memref<1x128xf32, #tpu.memory_space<vmem>>, %arg6: memref<128x128xbf16, #tpu.memory_space<vmem>>, %arg7: memref<1x128xf32, #tpu.memory_space<vmem>>, %arg8: memref<8x128xf32, #tpu.memory_space<vmem>>) attributes {dimension_semantics = [#tpu.dimension_semantics<parallel>], iteration_bounds = array<i64: 1>, scalar_prefetch = 0 : i64, scratch_operands = 0 : i64, tpu.core_type = #tpu.core_type<tc>, window_params = [{transform_indices = @transform_0, window_bounds = array<i64: 8, 64>}, {pipeline_mode = #tpu.pipeline_mode<synchronous>, transform_indices = @transform_1, window_bounds = array<i64: 64, 128>}, {pipeline_mode = #tpu.pipeline_mode<synchronous>, transform_indices = @transform_2, window_bounds = array<i64: 1, 128>}, {pipeline_mode = #tpu.pipeline_mode<synchronous>, transform_indices = @transform_3, window_bounds = array<i64: 128, 128>}, {pipeline_mode = #tpu.pipeline_mode<synchronous>, transform_indices = @transform_4, window_bounds = array<i64: 1, 128>}, {pipeline_mode = #tpu.pipeline_mode<synchronous>, transform_indices = @transform_5, window_bounds = array<i64: 128, 128>}, {pipeline_mode = #tpu.pipeline_mode<synchronous>, transform_indices = @transform_6, window_bounds = array<i64: 1, 128>}, {transform_indices = @transform_7, window_bounds = array<i64: 8, 128>}]} {
    %c0 = arith.constant 0 : index
    %c0_0 = arith.constant 0 : index
    %0 = vector.load %arg1[%c0, %c0_0] : memref<8x64xf32, #tpu.memory_space<vmem>>, vector<8x64xf32>
    %1 = arith.truncf %0 : vector<8x64xf32> to vector<8x64xbf16>
    %c0_1 = arith.constant 0 : index
    %c0_2 = arith.constant 0 : index
    %2 = vector.load %arg2[%c0_1, %c0_2] : memref<64x128xbf16, #tpu.memory_space<vmem>>, vector<64x128xbf16>
    %cst = arith.constant dense<0.000000e+00> : vector<8x128xf32>
    %3 = tpu.matmul %1, %2, %cst {dimension_numbers = #tpu.dot_dimension_numbers<[1], [0], [0], [1], [0, 0, 1, 1], [], []>} : vector<8x64xbf16>, vector<64x128xbf16>, vector<8x128xf32> -> vector<8x128xf32>
    %c0_3 = arith.constant 0 : index
    %c0_4 = arith.constant 0 : index
    %4 = vector.load %arg3[%c0_3, %c0_4] : memref<1x128xf32, #tpu.memory_space<vmem>>, vector<1x128xf32>
    %5 = vector.broadcast %4 : vector<1x128xf32> to vector<8x128xf32>
    %6 = arith.addf %3, %5 : vector<8x128xf32>
    %cst_5 = arith.constant 0.000000e+00 : f32
    %7 = vector.broadcast %cst_5 : f32 to vector<8x128xf32>
    %8 = arith.maximumf %6, %7 : vector<8x128xf32>
    %9 = arith.truncf %8 : vector<8x128xf32> to vector<8x128xbf16>
    %c0_6 = arith.constant 0 : index
    %c0_7 = arith.constant 0 : index
    %10 = vector.load %arg4[%c0_6, %c0_7] : memref<128x128xbf16, #tpu.memory_space<vmem>>, vector<128x128xbf16>
    %cst_8 = arith.constant dense<0.000000e+00> : vector<8x128xf32>
    %11 = tpu.matmul %9, %10, %cst_8 {dimension_numbers = #tpu.dot_dimension_numbers<[1], [0], [0], [1], [0, 0, 1, 1], [], []>} : vector<8x128xbf16>, vector<128x128xbf16>, vector<8x128xf32> -> vector<8x128xf32>
    %c0_9 = arith.constant 0 : index
    %c0_10 = arith.constant 0 : index
    %12 = vector.load %arg5[%c0_9, %c0_10] : memref<1x128xf32, #tpu.memory_space<vmem>>, vector<1x128xf32>
    %13 = vector.broadcast %12 : vector<1x128xf32> to vector<8x128xf32>
    %14 = arith.addf %11, %13 : vector<8x128xf32>
    %cst_11 = arith.constant 0.000000e+00 : f32
    %15 = vector.broadcast %cst_11 : f32 to vector<8x128xf32>
    %16 = arith.maximumf %14, %15 : vector<8x128xf32>
    %17 = arith.truncf %16 : vector<8x128xf32> to vector<8x128xbf16>
    %c0_12 = arith.constant 0 : index
    %c0_13 = arith.constant 0 : index
    %18 = vector.load %arg6[%c0_12, %c0_13] : memref<128x128xbf16, #tpu.memory_space<vmem>>, vector<128x128xbf16>
    %cst_14 = arith.constant dense<0.000000e+00> : vector<8x128xf32>
    %19 = tpu.matmul %17, %18, %cst_14 {dimension_numbers = #tpu.dot_dimension_numbers<[1], [0], [0], [1], [0, 0, 1, 1], [], []>} : vector<8x128xbf16>, vector<128x128xbf16>, vector<8x128xf32> -> vector<8x128xf32>
    %c0_15 = arith.constant 0 : index
    %c0_16 = arith.constant 0 : index
    %20 = vector.load %arg7[%c0_15, %c0_16] : memref<1x128xf32, #tpu.memory_space<vmem>>, vector<1x128xf32>
    %21 = vector.broadcast %20 : vector<1x128xf32> to vector<8x128xf32>
    %22 = arith.addf %19, %21 : vector<8x128xf32>
    %cst_17 = arith.constant dense<0xFF800000> : vector<8xf32>
    %23 = vector.multi_reduction <maximumf>, %22, %cst_17 [1] : vector<8x128xf32> to vector<8xf32>
    %24 = vector.shape_cast %23 : vector<8xf32> to vector<8x1xf32>
    %25 = vector.broadcast %24 : vector<8x1xf32> to vector<8x128xf32>
    %26 = arith.subf %22, %25 : vector<8x128xf32>
    %27 = math.exp %26 : vector<8x128xf32>
    %cst_18 = arith.constant dense<0.000000e+00> : vector<8xf32>
    %28 = vector.multi_reduction <add>, %27, %cst_18 [1] : vector<8x128xf32> to vector<8xf32>
    %29 = vector.shape_cast %28 : vector<8xf32> to vector<8x1xf32>
    %30 = vector.broadcast %29 : vector<8x1xf32> to vector<8x128xf32>
    %31 = arith.divf %27, %30 : vector<8x128xf32>
    %c0_19 = arith.constant 0 : index
    %c0_20 = arith.constant 0 : index
    %32 = vector.load %arg8[%c0_19, %c0_20] : memref<8x128xf32, #tpu.memory_space<vmem>>, vector<8x128xf32>
    tpu.vector_store %arg8[%c0_19, %c0_20], %31 {strides = array<i32>} : memref<8x128xf32, #tpu.memory_space<vmem>>, vector<8x128xf32>,
    return
  }
  func.func @transform_0(%arg0: i32) -> (i32, i32) {
    %c0_i32 = arith.constant 0 : i32
    %c0_i32_0 = arith.constant 0 : i32
    return %arg0, %c0_i32 : i32, i32
  }
  func.func @transform_1(%arg0: i32) -> (i32, i32) {
    %c0_i32 = arith.constant 0 : i32
    %c0_i32_0 = arith.constant 0 : i32
    %c0_i32_1 = arith.constant 0 : i32
    return %c0_i32, %c0_i32_0 : i32, i32
  }
  func.func @transform_2(%arg0: i32) -> (i32, i32) {
    %c0_i32 = arith.constant 0 : i32
    %c0_i32_0 = arith.constant 0 : i32
    %c0_i32_1 = arith.constant 0 : i32
    return %c0_i32, %c0_i32_0 : i32, i32
  }
  func.func @transform_3(%arg0: i32) -> (i32, i32) {
    %c0_i32 = arith.constant 0 : i32
    %c0_i32_0 = arith.constant 0 : i32
    %c0_i32_1 = arith.constant 0 : i32
    return %c0_i32, %c0_i32_0 : i32, i32
  }
  func.func @transform_4(%arg0: i32) -> (i32, i32) {
    %c0_i32 = arith.constant 0 : i32
    %c0_i32_0 = arith.constant 0 : i32
    %c0_i32_1 = arith.constant 0 : i32
    return %c0_i32, %c0_i32_0 : i32, i32
  }
  func.func @transform_5(%arg0: i32) -> (i32, i32) {
    %c0_i32 = arith.constant 0 : i32
    %c0_i32_0 = arith.constant 0 : i32
    %c0_i32_1 = arith.constant 0 : i32
    return %c0_i32, %c0_i32_0 : i32, i32
  }
  func.func @transform_6(%arg0: i32) -> (i32, i32) {
    %c0_i32 = arith.constant 0 : i32
    %c0_i32_0 = arith.constant 0 : i32
    %c0_i32_1 = arith.constant 0 : i32
    return %c0_i32, %c0_i32_0 : i32, i32
  }
  func.func @transform_7(%arg0: i32) -> (i32, i32) {
    %c0_i32 = arith.constant 0 : i32
    %c0_i32_0 = arith.constant 0 : i32
    return %arg0, %c0_i32 : i32, i32
  }
}

module attributes {stable_mosaic.version = 11 : i64} {
  func.func @_mlp_softmax_kernel(%arg0: i32, %arg1: memref<8x64xf32, #tpu.memory_space<vmem>>, %arg2: memref<64x128xbf16, #tpu.memory_space<vmem>>, %arg3: memref<1x128xf32, #tpu.memory_space<vmem>>, %arg4: memref<128x128xbf16, #tpu.memory_space<vmem>>, %arg5: memref<1x128xf32, #tpu.memory_space<vmem>>, %arg6: memref<128x128xbf16, #tpu.memory_space<vmem>>, %arg7: memref<1x128xf32, #tpu.memory_space<vmem>>, %arg8: memref<8x128xf32, #tpu.memory_space<vmem>>) attributes {dimension_semantics = [#tpu.dimension_semantics<parallel>], iteration_bounds = array<i64: 1>, scalar_prefetch = 0 : i64, scratch_operands = 0 : i64, tpu.core_type = #tpu.core_type<tc>, window_params = [{transform_indices = @transform_0, window_bounds = array<i64: 8, 64>}, {pipeline_mode = #tpu.pipeline_mode<synchronous>, transform_indices = @transform_1, window_bounds = array<i64: 64, 128>}, {pipeline_mode = #tpu.pipeline_mode<synchronous>, transform_indices = @transform_2, window_bounds = array<i64: 1, 128>}, {pipeline_mode = #tpu.pipeline_mode<synchronous>, transform_indices = @transform_3, window_bounds = array<i64: 128, 128>}, {pipeline_mode = #tpu.pipeline_mode<synchronous>, transform_indices = @transform_4, window_bounds = array<i64: 1, 128>}, {pipeline_mode = #tpu.pipeline_mode<synchronous>, transform_indices = @transform_5, window_bounds = array<i64: 128, 128>}, {pipeline_mode = #tpu.pipeline_mode<synchronous>, transform_indices = @transform_6, window_bounds = array<i64: 1, 128>}, {transform_indices = @transform_7, window_bounds = array<i64: 8, 128>}]} {
    %c0 = arith.constant 0 : index
    %c0_0 = arith.constant 0 : index
    %0 = vector.load %arg1[%c0, %c0_0] : memref<8x64xf32, #tpu.memory_space<vmem>>, vector<8x64xf32>
    %1 = arith.truncf %0 : vector<8x64xf32> to vector<8x64xbf16>
    %c0_1 = arith.constant 0 : index
    %c0_2 = arith.constant 0 : index
    %2 = vector.load %arg2[%c0_1, %c0_2] : memref<64x128xbf16, #tpu.memory_space<vmem>>, vector<64x128xbf16>
    %cst = arith.constant dense<0.000000e+00> : vector<8x128xf32>
    %3 = tpu.matmul %1, %2, %cst {dimension_numbers = #tpu.dot_dimension_numbers<[1], [0], [0], [1], [0, 0, 1, 1], [], []>} : vector<8x64xbf16>, vector<64x128xbf16>, vector<8x128xf32> -> vector<8x128xf32>
    %c0_3 = arith.constant 0 : index
    %c0_4 = arith.constant 0 : index
    %4 = vector.load %arg3[%c0_3, %c0_4] : memref<1x128xf32, #tpu.memory_space<vmem>>, vector<1x128xf32>
    %5 = vector.broadcast %4 : vector<1x128xf32> to vector<8x128xf32>
    %6 = arith.addf %3, %5 : vector<8x128xf32>
    %cst_5 = arith.constant 0.000000e+00 : f32
    %7 = vector.broadcast %cst_5 : f32 to vector<8x128xf32>
    %8 = arith.maximumf %6, %7 : vector<8x128xf32>
    %9 = arith.truncf %8 : vector<8x128xf32> to vector<8x128xbf16>
    %c0_6 = arith.constant 0 : index
    %c0_7 = arith.constant 0 : index
    %10 = vector.load %arg4[%c0_6, %c0_7] : memref<128x128xbf16, #tpu.memory_space<vmem>>, vector<128x128xbf16>
    %cst_8 = arith.constant dense<0.000000e+00> : vector<8x128xf32>
    %11 = tpu.matmul %9, %10, %cst_8 {dimension_numbers = #tpu.dot_dimension_numbers<[1], [0], [0], [1], [0, 0, 1, 1], [], []>} : vector<8x128xbf16>, vector<128x128xbf16>, vector<8x128xf32> -> vector<8x128xf32>
    %c0_9 = arith.constant 0 : index
    %c0_10 = arith.constant 0 : index
    %12 = vector.load %arg5[%c0_9, %c0_10] : memref<1x128xf32, #tpu.memory_space<vmem>>, vector<1x128xf32>
    %13 = vector.broadcast %12 : vector<1x128xf32> to vector<8x128xf32>
    %14 = arith.addf %11, %13 : vector<8x128xf32>
    %cst_11 = arith.constant 0.000000e+00 : f32
    %15 = vector.broadcast %cst_11 : f32 to vector<8x128xf32>
    %16 = arith.maximumf %14, %15 : vector<8x128xf32>
    %17 = arith.truncf %16 : vector<8x128xf32> to vector<8x128xbf16>
    %c0_12 = arith.constant 0 : index
    %c0_13 = arith.constant 0 : index
    %18 = vector.load %arg6[%c0_12, %c0_13] : memref<128x128xbf16, #tpu.memory_space<vmem>>, vector<128x128xbf16>
    %cst_14 = arith.constant dense<0.000000e+00> : vector<8x128xf32>
    %19 = tpu.matmul %17, %18, %cst_14 {dimension_numbers = #tpu.dot_dimension_numbers<[1], [0], [0], [1], [0, 0, 1, 1], [], []>} : vector<8x128xbf16>, vector<128x128xbf16>, vector<8x128xf32> -> vector<8x128xf32>
    %c0_15 = arith.constant 0 : index
    %c0_16 = arith.constant 0 : index
    %20 = vector.load %arg7[%c0_15, %c0_16] : memref<1x128xf32, #tpu.memory_space<vmem>>, vector<1x128xf32>
    %21 = vector.broadcast %20 : vector<1x128xf32> to vector<8x128xf32>
    %22 = arith.addf %19, %21 : vector<8x128xf32>
    %cst_17 = arith.constant dense<0xFF800000> : vector<8xf32>
    %23 = vector.multi_reduction <maximumf>, %22, %cst_17 [1] : vector<8x128xf32> to vector<8xf32>
    %24 = vector.shape_cast %23 : vector<8xf32> to vector<8x1xf32>
    %25 = vector.broadcast %24 : vector<8x1xf32> to vector<8x128xf32>
    %26 = arith.subf %22, %25 : vector<8x128xf32>
    %27 = math.exp %26 : vector<8x128xf32>
    %cst_18 = arith.constant dense<0.000000e+00> : vector<8xf32>
    %28 = vector.multi_reduction <add>, %27, %cst_18 [1] : vector<8x128xf32> to vector<8xf32>
    %29 = vector.shape_cast %28 : vector<8xf32> to vector<8x1xf32>
    %30 = vector.broadcast %29 : vector<8x1xf32> to vector<8x128xf32>
    %31 = arith.divf %27, %30 : vector<8x128xf32>
    %c0_19 = arith.constant 0 : index
    %c0_20 = arith.constant 0 : index
    %32 = vector.load %arg8[%c0_19, %c0_20] : memref<8x128xf32, #tpu.memory_space<vmem>>, vector<8x128xf32>
    tpu.vector_store %arg8[%c0_19, %c0_20], %31 {strides = array<i32>} : memref<8x128xf32, #tpu.memory_space<vmem>>, vector<8x128xf32>,
    return
  }
  func.func @transform_0(%arg0: i32) -> (i32, i32) {
    %c0_i32 = arith.constant 0 : i32
    %c0_i32_0 = arith.constant 0 : i32
    return %arg0, %c0_i32 : i32, i32
  }
  func.func @transform_1(%arg0: i32) -> (i32, i32) {
    %c0_i32 = arith.constant 0 : i32
    %c0_i32_0 = arith.constant 0 : i32
    %c0_i32_1 = arith.constant 0 : i32
    return %c0_i32, %c0_i32_0 : i32, i32
  }
  func.func @transform_2(%arg0: i32) -> (i32, i32) {
    %c0_i32 = arith.constant 0 : i32
    %c0_i32_0 = arith.constant 0 : i32
    %c0_i32_1 = arith.constant 0 : i32
    return %c0_i32, %c0_i32_0 : i32, i32
  }
  func.func @transform_3(%arg0: i32) -> (i32, i32) {
    %c0_i32 = arith.constant 0 : i32
    %c0_i32_0 = arith.constant 0 : i32
    %c0_i32_1 = arith.constant 0 : i32
    return %c0_i32, %c0_i32_0 : i32, i32
  }
  func.func @transform_4(%arg0: i32) -> (i32, i32) {
    %c0_i32 = arith.constant 0 : i32
    %c0_i32_0 = arith.constant 0 : i32
    %c0_i32_1 = arith.constant 0 : i32
    return %c0_i32, %c0_i32_0 : i32, i32
  }
  func.func @transform_5(%arg0: i32) -> (i32, i32) {
    %c0_i32 = arith.constant 0 : i32
    %c0_i32_0 = arith.constant 0 : i32
    %c0_i32_1 = arith.constant 0 : i32
    return %c0_i32, %c0_i32_0 : i32, i32
  }
  func.func @transform_6(%arg0: i32) -> (i32, i32) {
    %c0_i32 = arith.constant 0 : i32
    %c0_i32_0 = arith.constant 0 : i32
    %c0_i32_1 = arith.constant 0 : i32
    return %c0_i32, %c0_i32_0 : i32, i32
  }
  func.func @transform_7(%arg0: i32) -> (i32, i32) {
    %c0_i32 = arith.constant 0 : i32
    %c0_i32_0 = arith.constant 0 : i32
    return %arg0, %c0_i32 : i32, i32
  }
}

</mosaic_0001>

<llo_original>
// kernel: tpu_custom_call.1
$region0: #{tpu_custom_call.1}
  #allocation0 [shape = 'u32[]', space=smem, size = 0x4, offset = 0x4, fixed_abs, tag = 'smem constant byte address 0x4 - core index']
  #allocation1 [shape = 'u32[144,128]{1,0:T(1,128)}', space=vmem, size = 0x12000, scoped, tag = 'internal scratch']
  %s0 = inlined_call_operand.hbm [shape: f32[8,64], index: 0, kind: input, shape index: {}]
  %s1 = inlined_call_operand.hbm [shape: bf16[64,128], index: 1, kind: input, shape index: {}]
  %s2 = inlined_call_operand.hbm [shape: f32[1,128], index: 2, kind: input, shape index: {}]
  %s3 = inlined_call_operand.hbm [shape: bf16[128,128], index: 3, kind: input, shape index: {}]
  %s4 = inlined_call_operand.hbm [shape: f32[1,128], index: 4, kind: input, shape index: {}]
  %s5 = inlined_call_operand.hbm [shape: bf16[128,128], index: 5, kind: input, shape index: {}]
  %s6 = inlined_call_operand.hbm [shape: f32[1,128], index: 6, kind: input, shape index: {}]
  %s7 = inlined_call_operand.hbm [shape: f32[8,128], index: 7, kind: output, shape index: {}]
  %s8 = sld [smem:[#allocation0]]
  $region66: #{tpu_custom_call.1} parent=0
    _
  %s10 = ssub.s32 1, %s8
  %s11 = scalar_select 0, %s10, %s8
  $region1: #{tpu_custom_call.1} parent=0
    #allocation2 [shape = 'u8[4096]{0}', space=vmem, size = 0x1000, scoped, tag = 'input window, operand 0, single buffered']
    #allocation3 [shape = 's32[1]{0}', space=sflag, size = 0x4, scoped, tag = 'scoped memory for tpu_custom_call.1']
    #allocation4 [shape = 's32[1]{0}', space=sflag, size = 0x4, scoped, tag = 'scoped memory for tpu_custom_call.1']
    #allocation5 [shape = 'u8[16384]{0}', space=vmem, size = 0x4000, scoped, tag = 'input window, operand 1, single buffered']
    #allocation6 [shape = 's32[1]{0}', space=sflag, size = 0x4, scoped, tag = 'scoped memory for tpu_custom_call.1']
    #allocation7 [shape = 'u8[512]{0}', space=vmem, size = 0x400, scoped, tag = 'input window, operand 2, single buffered']
    #allocation8 [shape = 'u8[32768]{0}', space=vmem, size = 0x8000, scoped, tag = 'input window, operand 3, single buffered']
    #allocation9 [shape = 's32[1]{0}', space=sflag, size = 0x4, scoped, tag = 'scoped memory for tpu_custom_call.1']
    #allocation10 [shape = 'u8[512]{0}', space=vmem, size = 0x400, scoped, tag = 'input window, operand 4, single buffered']
    #allocation11 [shape = 'u8[32768]{0}', space=vmem, size = 0x8000, scoped, tag = 'input window, operand 5, single buffered']
    #allocation12 [shape = 's32[1]{0}', space=sflag, size = 0x4, scoped, tag = 'scoped memory for tpu_custom_call.1']
    #allocation13 [shape = 'u8[512]{0}', space=vmem, size = 0x400, scoped, tag = 'input window, operand 6, single buffered']
    #allocation14 [shape = 'u8[4096]{0}', space=vmem, size = 0x1000, scoped, tag = 'output window, operand 0, single buffered']
    %12 = vsyncpa [#allocation3], 0
    %13 = vsyncpa [#allocation6], 0
    %14 = vsyncpa [#allocation9], 0
    %15 = vsyncpa [#allocation12], 0
    %16 = vsyncpa [#allocation4], 0
    // Predicated region
    $region2: #{tpu_custom_call.1} parent=1 // pred_check
      _
    $region3: #{tpu_custom_call.1} parent=1 // pred_check_branch
      %18 = sbr.rel (0) target = $region5
    $region4: #{tpu_custom_call.1} parent=1 // pred_region
      %s20 = ssub.s32 128, 128
      %21 = vsyncadd [#allocation3], %s20
      %s23 = sshll.u32 [#allocation2], 4
      %s24 = int_to_ptr.vmem [resolvable:$true] %s23
      %26 = dma.hbm_to_vmem [thread:$0]  %s0, 128, %s24, [#allocation3]
    $region5: #{tpu_custom_call.1} parent=1 // pred_fallthru
      _
    // Predicated region
    $region6: #{tpu_custom_call.1} parent=1 // pred_check
      _
    $region7: #{tpu_custom_call.1} parent=1 // pred_check_branch
      %28 = sbr.rel (0) target = $region9
    $region8: #{tpu_custom_call.1} parent=1 // pred_region
      %s30 = ssub.s32 512, 512
      %31 = vsyncadd [#allocation6], %s30
      %s32 = sshll.u32 [#allocation5], 4
      %s33 = int_to_ptr.vmem [resolvable:$true] %s32
      %38 = dma.hbm_to_vmem [thread:$0]  %s1, 512, %s33, [#allocation6], 64, 64, 4
    $region9: #{tpu_custom_call.1} parent=1 // pred_fallthru
      _
    // Predicated region
    $region10: #{tpu_custom_call.1} parent=1 // pred_check
      _
    $region11: #{tpu_custom_call.1} parent=1 // pred_check_branch
      %40 = sbr.rel (0) target = $region13
    $region12: #{tpu_custom_call.1} parent=1 // pred_region
      %s42 = ssub.s32 16, 16
      %43 = vsyncadd [#allocation6], %s42
      %s45 = sshll.u32 [#allocation7], 4
      %s46 = int_to_ptr.vmem [resolvable:$true] %s45
      %48 = dma.hbm_to_vmem [thread:$0]  %s2, 16, %s46, [#allocation6]
    $region13: #{tpu_custom_call.1} parent=1 // pred_fallthru
      _
    // Predicated region
    $region14: #{tpu_custom_call.1} parent=1 // pred_check
      _
    $region15: #{tpu_custom_call.1} parent=1 // pred_check_branch
      %50 = sbr.rel (0) target = $region17
    $region16: #{tpu_custom_call.1} parent=1 // pred_region
      %s52 = ssub.s32 1024, 1024
      %53 = vsyncadd [#allocation9], %s52
      %s54 = sshll.u32 [#allocation8], 4
      %s55 = int_to_ptr.vmem [resolvable:$true] %s54
      %60 = dma.hbm_to_vmem [thread:$0]  %s3, 1024, %s55, [#allocation9], 64, 64, 4
    $region17: #{tpu_custom_call.1} parent=1 // pred_fallthru
      _
    // Predicated region
    $region18: #{tpu_custom_call.1} parent=1 // pred_check
      _
    $region19: #{tpu_custom_call.1} parent=1 // pred_check_branch
      %62 = sbr.rel (0) target = $region21
    $region20: #{tpu_custom_call.1} parent=1 // pred_region
      %s64 = ssub.s32 16, 16
      %65 = vsyncadd [#allocation9], %s64
      %s67 = sshll.u32 [#allocation10], 4
      %s68 = int_to_ptr.vmem [resolvable:$true] %s67
      %70 = dma.hbm_to_vmem [thread:$0]  %s4, 16, %s68, [#allocation9]
    $region21: #{tpu_custom_call.1} parent=1 // pred_fallthru
      _
    // Predicated region
    $region22: #{tpu_custom_call.1} parent=1 // pred_check
      _
    $region23: #{tpu_custom_call.1} parent=1 // pred_check_branch
      %72 = sbr.rel (0) target = $region25
    $region24: #{tpu_custom_call.1} parent=1 // pred_region
      %s74 = ssub.s32 1024, 1024
      %75 = vsyncadd [#allocation12], %s74
      %s76 = sshll.u32 [#allocation11], 4
      %s77 = int_to_ptr.vmem [resolvable:$true] %s76
      %82 = dma.hbm_to_vmem [thread:$0]  %s5, 1024, %s77, [#allocation12], 64, 64, 4
    $region25: #{tpu_custom_call.1} parent=1 // pred_fallthru
      _
    // Predicated region
    $region26: #{tpu_custom_call.1} parent=1 // pred_check
      _
    $region27: #{tpu_custom_call.1} parent=1 // pred_check_branch
      %84 = sbr.rel (0) target = $region29
    $region28: #{tpu_custom_call.1} parent=1 // pred_region
      %s86 = ssub.s32 16, 16
      %87 = vsyncadd [#allocation12], %s86
      %s89 = sshll.u32 [#allocation13], 4
      %s90 = int_to_ptr.vmem [resolvable:$true] %s89
      %92 = dma.hbm_to_vmem [thread:$0]  %s6, 16, %s90, [#allocation12]
    $region29: #{tpu_custom_call.1} parent=1 // pred_fallthru
      _
    // Predicated region
    $region30: #{tpu_custom_call.1} parent=1 // pred_check
      _
    $region31: #{tpu_custom_call.1} parent=1 // pred_check_branch
      %94 = sbr.rel (0) target = $region33
    $region32: #{tpu_custom_call.1} parent=1 // pred_region
      %95 = dma.done [#allocation3], 128
    $region33: #{tpu_custom_call.1} parent=1 // pred_fallthru
      _
    // Predicated region
    $region34: #{tpu_custom_call.1} parent=1 // pred_check
      _
    $region35: #{tpu_custom_call.1} parent=1 // pred_check_branch
      %97 = sbr.rel (0) target = $region37
    $region36: #{tpu_custom_call.1} parent=1 // pred_region
      %98 = dma.done [#allocation6], 512
    $region37: #{tpu_custom_call.1} parent=1 // pred_fallthru
      _
    // Predicated region
    $region38: #{tpu_custom_call.1} parent=1 // pred_check
      _
    $region39: #{tpu_custom_call.1} parent=1 // pred_check_branch
      %100 = sbr.rel (0) target = $region41
    $region40: #{tpu_custom_call.1} parent=1 // pred_region
      %101 = dma.done [#allocation6], 16
    $region41: #{tpu_custom_call.1} parent=1 // pred_fallthru
      _
    // Predicated region
    $region42: #{tpu_custom_call.1} parent=1 // pred_check
      _
    $region43: #{tpu_custom_call.1} parent=1 // pred_check_branch
      %103 = sbr.rel (0) target = $region45
    $region44: #{tpu_custom_call.1} parent=1 // pred_region
      %104 = dma.done [#allocation9], 1024
    $region45: #{tpu_custom_call.1} parent=1 // pred_fallthru
      _
    // Predicated region
    $region46: #{tpu_custom_call.1} parent=1 // pred_check
      _
    $region47: #{tpu_custom_call.1} parent=1 // pred_check_branch
      %106 = sbr.rel (0) target = $region49
    $region48: #{tpu_custom_call.1} parent=1 // pred_region
      %107 = dma.done [#allocation9], 16
    $region49: #{tpu_custom_call.1} parent=1 // pred_fallthru
      _
    // Predicated region
    $region50: #{tpu_custom_call.1} parent=1 // pred_check
      _
    $region51: #{tpu_custom_call.1} parent=1 // pred_check_branch
      %109 = sbr.rel (0) target = $region53
    $region52: #{tpu_custom_call.1} parent=1 // pred_region
      %110 = dma.done [#allocation12], 1024
    $region53: #{tpu_custom_call.1} parent=1 // pred_fallthru
      _
    // Predicated region
    $region54: #{tpu_custom_call.1} parent=1 // pred_check
      _
    $region55: #{tpu_custom_call.1} parent=1 // pred_check_branch
      %112 = sbr.rel (0) target = $region57
    $region56: #{tpu_custom_call.1} parent=1 // pred_region
      %113 = dma.done [#allocation12], 16
    $region57: #{tpu_custom_call.1} parent=1 // pred_fallthru
      _
    %v115 = vld [vmem:[#allocation2] sm:$0xff]
    %v116 = vpack.c.bf16 %v115, %v115
    %v117 = vld [vmem:[#allocation5] sm:$0xf]
    %v118 = vld [vmem:[#allocation5 + $0x4] sm:$0xf]
    %v119 = vld [vmem:[#allocation5 + $0x8] sm:$0xf]
    %v120 = vld [vmem:[#allocation5 + $0xc] sm:$0xf]
    %v121 = vld [vmem:[#allocation5 + $0x10] sm:$0xf]
    %v122 = vld [vmem:[#allocation5 + $0x14] sm:$0xf]
    %v123 = vld [vmem:[#allocation5 + $0x18] sm:$0xf]
    %v124 = vld [vmem:[#allocation5 + $0x1c] sm:$0xf]
    %v125 = vld [vmem:[#allocation7] sm:$0x1]
    %v127 = vlaneseq
    %v128 = vshrl.u32 %v127, 7
    %v129 = vsub.s32 0, %v128
    %v130 = vrot.slane %v125, %v129
    %v140 = vunpack.c.l.b16 %v117
    %v141 = vunpack.c.l.b16 %v118
    %v142 = vunpack.c.l.b16 %v119
    %v143 = vunpack.c.l.b16 %v120
    %v144 = vunpack.c.l.b16 %v121
    %v145 = vunpack.c.l.b16 %v122
    %v146 = vunpack.c.l.b16 %v123
    %v147 = vunpack.c.l.b16 %v124
    %v148 = vpack.c.b16 %v141, %v140
    %v149 = vpack.c.b16 %v143, %v142
    %v150 = vpack.c.b16 %v145, %v144
    %v151 = vpack.c.b16 %v147, %v146
    %vm156 = vcmask 523264
    %v158 = vsel %vm156, %v116, 0
    %160 = vmatprep.subr.bf16.mxu0 0
    %161 = vmatpush1.bf16.msra.mxu0 %v148
    %162 = vmatprep.subr.bf16.mxu0 0
    %163 = vmatpush1.bf16.msra.mxu0 %v149
    %164 = vmatprep.subr.bf16.mxu0 0
    %165 = vmatpush1.bf16.msra.mxu0 %v150
    %166 = vmatprep.subr.bf16.mxu0 0
    %167 = vmatpush1.bf16.msra.mxu0 %v151
    %168 = vmatprep.subr.bf16.mxu0 0
    %169 = vmatpush1.bf16.msra.mxu0 0
    %170 = vmatprep.subr.bf16.mxu0 0
    %171 = vmatpush1.bf16.msra.mxu0 0
    %172 = vmatprep.subr.bf16.mxu0 0
    %173 = vmatpush1.bf16.msra.mxu0 0
    %174 = vmatprep.subr.bf16.mxu0 0
    %175 = vmatpush1.bf16.msra.mxu0 0
    %176 = vmatprep.subr.bf16.mxu0 0
    %177 = vmatpush1.bf16.msra.mxu0 0
    %178 = vmatprep.subr.bf16.mxu0 0
    %179 = vmatpush1.bf16.msra.mxu0 0
    %180 = vmatprep.subr.bf16.mxu0 0
    %181 = vmatpush1.bf16.msra.mxu0 0
    %182 = vmatprep.subr.bf16.mxu0 0
    %183 = vmatpush1.bf16.msra.mxu0 0
    %184 = vmatprep.subr.bf16.mxu0 0
    %185 = vmatpush1.bf16.msra.mxu0 0
    %186 = vmatprep.subr.bf16.mxu0 0
    %187 = vmatpush1.bf16.msra.mxu0 0
    %188 = vmatprep.subr.bf16.mxu0 0
    %189 = vmatpush1.bf16.msra.mxu0 0
    %190 = vmatprep.subr.bf16.mxu0 0
    %191 = vmatpush1.bf16.msra.mxu0 0
    %192 = vmatprep.mubr.bf16.mxu0 0
    %193 = vmatmul.mubr.bf16.gmra.mrb[0].mxu0 %v158
    %v194 = vpop.f32.mrb[0].mxu0
    %v195 = vadd.f32 %v130, %v194
    %v196 = vpop.f32.mrb[0].mxu0
    %v197 = vpop.f32.mrb[0].mxu0
    %v198 = vpop.f32.mrb[0].mxu0
    %199 = vdwg.mxu0
    %v200 = vmax.f32 %v195, 0.0
    %v201 = vpack.c.bf16 %v200, %v200
    %v202 = vld [vmem:[#allocation8] sm:$0xf]
    %v203 = vld [vmem:[#allocation8 + $0x4] sm:$0xf]
    %v204 = vld [vmem:[#allocation8 + $0x8] sm:$0xf]
    %v205 = vld [vmem:[#allocation8 + $0xc] sm:$0xf]
    %v206 = vld [vmem:[#allocation8 + $0x10] sm:$0xf]
    %v207 = vld [vmem:[#allocation8 + $0x14] sm:$0xf]
    %v208 = vld [vmem:[#allocation8 + $0x18] sm:$0xf]
    %v209 = vld [vmem:[#allocation8 + $0x1c] sm:$0xf]
    %v210 = vld [vmem:[#allocation8 + $0x20] sm:$0xf]
    %v211 = vld [vmem:[#allocation8 + $0x24] sm:$0xf]
    %v212 = vld [vmem:[#allocation8 + $0x28] sm:$0xf]
    %v213 = vld [vmem:[#allocation8 + $0x2c] sm:$0xf]
    %v214 = vld [vmem:[#allocation8 + $0x30] sm:$0xf]
    %v215 = vld [vmem:[#allocation8 + $0x34] sm:$0xf]
    %v216 = vld [vmem:[#allocation8 + $0x38] sm:$0xf]
    %v217 = vld [vmem:[#allocation8 + $0x3c] sm:$0xf]
    %v218 = vld [vmem:[#allocation10] sm:$0x1]
    %v220 = vlaneseq
    %v221 = vshrl.u32 %v220, 7
    %v222 = vsub.s32 0, %v221
    %v223 = vrot.slane %v218, %v222
    %v241 = vunpack.c.l.b16 %v202
    %v242 = vunpack.c.l.b16 %v203
    %v243 = vunpack.c.l.b16 %v204
    %v244 = vunpack.c.l.b16 %v205
    %v245 = vunpack.c.l.b16 %v206
    %v246 = vunpack.c.l.b16 %v207
    %v247 = vunpack.c.l.b16 %v208
    %v248 = vunpack.c.l.b16 %v209
    %v249 = vunpack.c.l.b16 %v210
    %v250 = vunpack.c.l.b16 %v211
    %v251 = vunpack.c.l.b16 %v212
    %v252 = vunpack.c.l.b16 %v213
    %v253 = vunpack.c.l.b16 %v214
    %v254 = vunpack.c.l.b16 %v215
    %v255 = vunpack.c.l.b16 %v216
    %v256 = vunpack.c.l.b16 %v217
    %v257 = vpack.c.b16 %v242, %v241
    %v258 = vpack.c.b16 %v244, %v243
    %v259 = vpack.c.b16 %v246, %v245
    %v260 = vpack.c.b16 %v248, %v247
    %v261 = vpack.c.b16 %v250, %v249
    %v262 = vpack.c.b16 %v252, %v251
    %v263 = vpack.c.b16 %v254, %v253
    %v264 = vpack.c.b16 %v256, %v255
    %273 = vmatprep.subr.bf16.mxu0 0
    %274 = vmatpush1.bf16.msra.mxu0 %v257
    %275 = vmatprep.subr.bf16.mxu0 0
    %276 = vmatpush1.bf16.msra.mxu0 %v258
    %277 = vmatprep.subr.bf16.mxu0 0
    %278 = vmatpush1.bf16.msra.mxu0 %v259
    %279 = vmatprep.subr.bf16.mxu0 0
    %280 = vmatpush1.bf16.msra.mxu0 %v260
    %281 = vmatprep.subr.bf16.mxu0 0
    %282 = vmatpush1.bf16.msra.mxu0 %v261
    %283 = vmatprep.subr.bf16.mxu0 0
    %284 = vmatpush1.bf16.msra.mxu0 %v262
    %285 = vmatprep.subr.bf16.mxu0 0
    %286 = vmatpush1.bf16.msra.mxu0 %v263
    %287 = vmatprep.subr.bf16.mxu0 0
    %288 = vmatpush1.bf16.msra.mxu0 %v264
    %289 = vmatprep.subr.bf16.mxu0 0
    %290 = vmatpush1.bf16.msra.mxu0 0
    %291 = vmatprep.subr.bf16.mxu0 0
    %292 = vmatpush1.bf16.msra.mxu0 0
    %293 = vmatprep.subr.bf16.mxu0 0
    %294 = vmatpush1.bf16.msra.mxu0 0
    %295 = vmatprep.subr.bf16.mxu0 0
    %296 = vmatpush1.bf16.msra.mxu0 0
    %297 = vmatprep.subr.bf16.mxu0 0
    %298 = vmatpush1.bf16.msra.mxu0 0
    %299 = vmatprep.subr.bf16.mxu0 0
    %300 = vmatpush1.bf16.msra.mxu0 0
    %301 = vmatprep.subr.bf16.mxu0 0
    %302 = vmatpush1.bf16.msra.mxu0 0
    %303 = vmatprep.subr.bf16.mxu0 0
    %304 = vmatpush1.bf16.msra.mxu0 0
    %305 = vmatprep.mubr.bf16.mxu0 0
    %306 = vmatmul.mubr.bf16.gmra.mrb[0].mxu0 %v201
    %v307 = vpop.f32.mrb[0].mxu0
    %v308 = vadd.f32 %v223, %v307
    %v309 = vpop.f32.mrb[0].mxu0
    %v310 = vpop.f32.mrb[0].mxu0
    %v311 = vpop.f32.mrb[0].mxu0
    %312 = vdwg.mxu0
    %v313 = vmax.f32 %v308, 0.0
    %v314 = vpack.c.bf16 %v313, %v313
    %v315 = vld [vmem:[#allocation11] sm:$0xf]
    %v316 = vld [vmem:[#allocation11 + $0x4] sm:$0xf]
    %v317 = vld [vmem:[#allocation11 + $0x8] sm:$0xf]
    %v318 = vld [vmem:[#allocation11 + $0xc] sm:$0xf]
    %v319 = vld [vmem:[#allocation11 + $0x10] sm:$0xf]
    %v320 = vld [vmem:[#allocation11 + $0x14] sm:$0xf]
    %v321 = vld [vmem:[#allocation11 + $0x18] sm:$0xf]
    %v322 = vld [vmem:[#allocation11 + $0x1c] sm:$0xf]
    %v323 = vld [vmem:[#allocation11 + $0x20] sm:$0xf]
    %v324 = vld [vmem:[#allocation11 + $0x24] sm:$0xf]
    %v325 = vld [vmem:[#allocation11 + $0x28] sm:$0xf]
    %v326 = vld [vmem:[#allocation11 + $0x2c] sm:$0xf]
    %v327 = vld [vmem:[#allocation11 + $0x30] sm:$0xf]
    %v328 = vld [vmem:[#allocation11 + $0x34] sm:$0xf]
    %v329 = vld [vmem:[#allocation11 + $0x38] sm:$0xf]
    %v330 = vld [vmem:[#allocation11 + $0x3c] sm:$0xf]
    %v331 = vld [vmem:[#allocation13] sm:$0x1]
    %v333 = vlaneseq
    %v334 = vshrl.u32 %v333, 7
    %v335 = vsub.s32 0, %v334
    %v336 = vrot.slane %v331, %v335
    %v354 = vunpack.c.l.b16 %v315
    %v355 = vunpack.c.l.b16 %v316
    %v356 = vunpack.c.l.b16 %v317
    %v357 = vunpack.c.l.b16 %v318
    %v358 = vunpack.c.l.b16 %v319
    %v359 = vunpack.c.l.b16 %v320
    %v360 = vunpack.c.l.b16 %v321
    %v361 = vunpack.c.l.b16 %v322
    %v362 = vunpack.c.l.b16 %v323
    %v363 = vunpack.c.l.b16 %v324
    %v364 = vunpack.c.l.b16 %v325
    %v365 = vunpack.c.l.b16 %v326
    %v366 = vunpack.c.l.b16 %v327
    %v367 = vunpack.c.l.b16 %v328
    %v368 = vunpack.c.l.b16 %v329
    %v369 = vunpack.c.l.b16 %v330
    %v370 = vpack.c.b16 %v355, %v354
    %v371 = vpack.c.b16 %v357, %v356
    %v372 = vpack.c.b16 %v359, %v358
    %v373 = vpack.c.b16 %v361, %v360
    %v374 = vpack.c.b16 %v363, %v362
    %v375 = vpack.c.b16 %v365, %v364
    %v376 = vpack.c.b16 %v367, %v366
    %v377 = vpack.c.b16 %v369, %v368
    %386 = vmatprep.subr.bf16.mxu0 0
    %387 = vmatpush1.bf16.msra.mxu0 %v370
    %388 = vmatprep.subr.bf16.mxu0 0
    %389 = vmatpush1.bf16.msra.mxu0 %v371
    %390 = vmatprep.subr.bf16.mxu0 0
    %391 = vmatpush1.bf16.msra.mxu0 %v372
    %392 = vmatprep.subr.bf16.mxu0 0
    %393 = vmatpush1.bf16.msra.mxu0 %v373
    %394 = vmatprep.subr.bf16.mxu0 0
    %395 = vmatpush1.bf16.msra.mxu0 %v374
    %396 = vmatprep.subr.bf16.mxu0 0
    %397 = vmatpush1.bf16.msra.mxu0 %v375
    %398 = vmatprep.subr.bf16.mxu0 0
    %399 = vmatpush1.bf16.msra.mxu0 %v376
    %400 = vmatprep.subr.bf16.mxu0 0
    %401 = vmatpush1.bf16.msra.mxu0 %v377
    %402 = vmatprep.subr.bf16.mxu0 0
    %403 = vmatpush1.bf16.msra.mxu0 0
    %404 = vmatprep.subr.bf16.mxu0 0
    %405 = vmatpush1.bf16.msra.mxu0 0
    %406 = vmatprep.subr.bf16.mxu0 0
    %407 = vmatpush1.bf16.msra.mxu0 0
    %408 = vmatprep.subr.bf16.mxu0 0
    %409 = vmatpush1.bf16.msra.mxu0 0
    %410 = vmatprep.subr.bf16.mxu0 0
    %411 = vmatpush1.bf16.msra.mxu0 0
    %412 = vmatprep.subr.bf16.mxu0 0
    %413 = vmatpush1.bf16.msra.mxu0 0
    %414 = vmatprep.subr.bf16.mxu0 0
    %415 = vmatpush1.bf16.msra.mxu0 0
    %416 = vmatprep.subr.bf16.mxu0 0
    %417 = vmatpush1.bf16.msra.mxu0 0
    %418 = vmatprep.mubr.bf16.mxu0 0
    %419 = vmatmul.mubr.bf16.gmra.mrb[0].mxu0 %v314
    %v420 = vpop.f32.mrb[0].mxu0
    %v421 = vadd.f32 %v336, %v420
    %v422 = vpop.f32.mrb[0].mxu0
    %v423 = vpop.f32.mrb[0].mxu0
    %v424 = vpop.f32.mrb[0].mxu0
    %425 = vdwg.mxu0
    %426 = vmax.xlane.f32.xlu0 %v421
    %v427 = vpop.xlane.xlu0 %426
    %v428 = vsub.f32 %v421, %v427
    %v429 = vmul.f32 %v428, 1.442695
    %v430 = vpow.pop %v429
    %431 = vadd.xlane.f32.xlu0 %v430
    %v432 = vpop.xlane.xlu0 %431
    %v433 = vrcp.pop %v432
    %v434 = vmul.f32 %v430, %v433
    %435 = vst [vmem:[#allocation14] sm:$0xff] %v434
    // Predicated region
    $region58: #{tpu_custom_call.1} parent=1 // pred_check
      _
    $region59: #{tpu_custom_call.1} parent=1 // pred_check_branch
      %437 = sbr.rel (0) target = $region61
    $region60: #{tpu_custom_call.1} parent=1 // pred_region
      %s439 = ssub.s32 128, 128
      %440 = vsyncadd [#allocation4], %s439
      %s442 = sshll.u32 [#allocation14], 4
      %s443 = int_to_ptr.vmem [resolvable:$true] %s442
      %445 = dma.vmem_to_hbm [thread:$0]  %s443, 128, %s7, [#allocation4]
    $region61: #{tpu_custom_call.1} parent=1 // pred_fallthru
      _
    // Predicated region
    $region62: #{tpu_custom_call.1} parent=1 // pred_check
      _
    $region63: #{tpu_custom_call.1} parent=1 // pred_check_branch
      %447 = sbr.rel (0) target = $region65
    $region64: #{tpu_custom_call.1} parent=1 // pred_region
      %448 = dma.done [#allocation4], 128
    $region65: #{tpu_custom_call.1} parent=1 // pred_fallthru
      _
    %449 = vsyncpa [#allocation3], 1
    %450 = vsyncpa [#allocation6], 1
    %451 = vsyncpa [#allocation9], 1
    %452 = vsyncpa [#allocation12], 1
    %453 = vsyncpa [#allocation4], 1

// kernel: tpu_custom_call.1
$region0: #{tpu_custom_call.1}
  #allocation0 [shape = 'u32[]', space=smem, size = 0x4, offset = 0x4, fixed_abs, tag = 'smem constant byte address 0x4 - core index']
  #allocation1 [shape = 'u32[144,128]{1,0:T(1,128)}', space=vmem, size = 0x12000, scoped, tag = 'internal scratch']
  %s0 = inlined_call_operand.hbm [shape: f32[8,64], index: 0, kind: input, shape index: {}]
  %s1 = inlined_call_operand.hbm [shape: bf16[64,128], index: 1, kind: input, shape index: {}]
  %s2 = inlined_call_operand.hbm [shape: f32[1,128], index: 2, kind: input, shape index: {}]
  %s3 = inlined_call_operand.hbm [shape: bf16[128,128], index: 3, kind: input, shape index: {}]
  %s4 = inlined_call_operand.hbm [shape: f32[1,128], index: 4, kind: input, shape index: {}]
  %s5 = inlined_call_operand.hbm [shape: bf16[128,128], index: 5, kind: input, shape index: {}]
  %s6 = inlined_call_operand.hbm [shape: f32[1,128], index: 6, kind: input, shape index: {}]
  %s7 = inlined_call_operand.hbm [shape: f32[8,128], index: 7, kind: output, shape index: {}]
  %s8 = sld [smem:[#allocation0]]
  $region66: #{tpu_custom_call.1} parent=0
    _
  %s10 = ssub.s32 1, %s8
  %s11 = scalar_select 0, %s10, %s8
  $region1: #{tpu_custom_call.1} parent=0
    #allocation2 [shape = 'u8[4096]{0}', space=vmem, size = 0x1000, scoped, tag = 'input window, operand 0, single buffered']
    #allocation3 [shape = 's32[1]{0}', space=sflag, size = 0x4, scoped, tag = 'scoped memory for tpu_custom_call.1']
    #allocation4 [shape = 's32[1]{0}', space=sflag, size = 0x4, scoped, tag = 'scoped memory for tpu_custom_call.1']
    #allocation5 [shape = 'u8[16384]{0}', space=vmem, size = 0x4000, scoped, tag = 'input window, operand 1, single buffered']
    #allocation6 [shape = 's32[1]{0}', space=sflag, size = 0x4, scoped, tag = 'scoped memory for tpu_custom_call.1']
    #allocation7 [shape = 'u8[512]{0}', space=vmem, size = 0x400, scoped, tag = 'input window, operand 2, single buffered']
    #allocation8 [shape = 'u8[32768]{0}', space=vmem, size = 0x8000, scoped, tag = 'input window, operand 3, single buffered']
    #allocation9 [shape = 's32[1]{0}', space=sflag, size = 0x4, scoped, tag = 'scoped memory for tpu_custom_call.1']
    #allocation10 [shape = 'u8[512]{0}', space=vmem, size = 0x400, scoped, tag = 'input window, operand 4, single buffered']
    #allocation11 [shape = 'u8[32768]{0}', space=vmem, size = 0x8000, scoped, tag = 'input window, operand 5, single buffered']
    #allocation12 [shape = 's32[1]{0}', space=sflag, size = 0x4, scoped, tag = 'scoped memory for tpu_custom_call.1']
    #allocation13 [shape = 'u8[512]{0}', space=vmem, size = 0x400, scoped, tag = 'input window, operand 6, single buffered']
    #allocation14 [shape = 'u8[4096]{0}', space=vmem, size = 0x1000, scoped, tag = 'output window, operand 0, single buffered']
    %12 = vsyncpa [#allocation3], 0
    %13 = vsyncpa [#allocation6], 0
    %14 = vsyncpa [#allocation9], 0
    %15 = vsyncpa [#allocation12], 0
    %16 = vsyncpa [#allocation4], 0
    // Predicated region
    $region2: #{tpu_custom_call.1} parent=1 // pred_check
      _
    $region3: #{tpu_custom_call.1} parent=1 // pred_check_branch
      %18 = sbr.rel (0) target = $region5
    $region4: #{tpu_custom_call.1} parent=1 // pred_region
      %s20 = ssub.s32 128, 128
      %21 = vsyncadd [#allocation3], %s20
      %s23 = sshll.u32 [#allocation2], 4
      %s24 = int_to_ptr.vmem [resolvable:$true] %s23
      %26 = dma.hbm_to_vmem [thread:$0]  %s0, 128, %s24, [#allocation3]
    $region5: #{tpu_custom_call.1} parent=1 // pred_fallthru
      _
    // Predicated region
    $region6: #{tpu_custom_call.1} parent=1 // pred_check
      _
    $region7: #{tpu_custom_call.1} parent=1 // pred_check_branch
      %28 = sbr.rel (0) target = $region9
    $region8: #{tpu_custom_call.1} parent=1 // pred_region
      %s30 = ssub.s32 512, 512
      %31 = vsyncadd [#allocation6], %s30
      %s32 = sshll.u32 [#allocation5], 4
      %s33 = int_to_ptr.vmem [resolvable:$true] %s32
      %38 = dma.hbm_to_vmem [thread:$0]  %s1, 512, %s33, [#allocation6], 64, 64, 4
    $region9: #{tpu_custom_call.1} parent=1 // pred_fallthru
      _
    // Predicated region
    $region10: #{tpu_custom_call.1} parent=1 // pred_check
      _
    $region11: #{tpu_custom_call.1} parent=1 // pred_check_branch
      %40 = sbr.rel (0) target = $region13
    $region12: #{tpu_custom_call.1} parent=1 // pred_region
      %s42 = ssub.s32 16, 16
      %43 = vsyncadd [#allocation6], %s42
      %s45 = sshll.u32 [#allocation7], 4
      %s46 = int_to_ptr.vmem [resolvable:$true] %s45
      %48 = dma.hbm_to_vmem [thread:$0]  %s2, 16, %s46, [#allocation6]
    $region13: #{tpu_custom_call.1} parent=1 // pred_fallthru
      _
    // Predicated region
    $region14: #{tpu_custom_call.1} parent=1 // pred_check
      _
    $region15: #{tpu_custom_call.1} parent=1 // pred_check_branch
      %50 = sbr.rel (0) target = $region17
    $region16: #{tpu_custom_call.1} parent=1 // pred_region
      %s52 = ssub.s32 1024, 1024
      %53 = vsyncadd [#allocation9], %s52
      %s54 = sshll.u32 [#allocation8], 4
      %s55 = int_to_ptr.vmem [resolvable:$true] %s54
      %60 = dma.hbm_to_vmem [thread:$0]  %s3, 1024, %s55, [#allocation9], 64, 64, 4
    $region17: #{tpu_custom_call.1} parent=1 // pred_fallthru
      _
    // Predicated region
    $region18: #{tpu_custom_call.1} parent=1 // pred_check
      _
    $region19: #{tpu_custom_call.1} parent=1 // pred_check_branch
      %62 = sbr.rel (0) target = $region21
    $region20: #{tpu_custom_call.1} parent=1 // pred_region
      %s64 = ssub.s32 16, 16
      %65 = vsyncadd [#allocation9], %s64
      %s67 = sshll.u32 [#allocation10], 4
      %s68 = int_to_ptr.vmem [resolvable:$true] %s67
      %70 = dma.hbm_to_vmem [thread:$0]  %s4, 16, %s68, [#allocation9]
    $region21: #{tpu_custom_call.1} parent=1 // pred_fallthru
      _
    // Predicated region
    $region22: #{tpu_custom_call.1} parent=1 // pred_check
      _
    $region23: #{tpu_custom_call.1} parent=1 // pred_check_branch
      %72 = sbr.rel (0) target = $region25
    $region24: #{tpu_custom_call.1} parent=1 // pred_region
      %s74 = ssub.s32 1024, 1024
      %75 = vsyncadd [#allocation12], %s74
      %s76 = sshll.u32 [#allocation11], 4
      %s77 = int_to_ptr.vmem [resolvable:$true] %s76
      %82 = dma.hbm_to_vmem [thread:$0]  %s5, 1024, %s77, [#allocation12], 64, 64, 4
    $region25: #{tpu_custom_call.1} parent=1 // pred_fallthru
      _
    // Predicated region
    $region26: #{tpu_custom_call.1} parent=1 // pred_check
      _
    $region27: #{tpu_custom_call.1} parent=1 // pred_check_branch
      %84 = sbr.rel (0) target = $region29
    $region28: #{tpu_custom_call.1} parent=1 // pred_region
      %s86 = ssub.s32 16, 16
      %87 = vsyncadd [#allocation12], %s86
      %s89 = sshll.u32 [#allocation13], 4
      %s90 = int_to_ptr.vmem [resolvable:$true] %s89
      %92 = dma.hbm_to_vmem [thread:$0]  %s6, 16, %s90, [#allocation12]
    $region29: #{tpu_custom_call.1} parent=1 // pred_fallthru
      _
    // Predicated region
    $region30: #{tpu_custom_call.1} parent=1 // pred_check
      _
    $region31: #{tpu_custom_call.1} parent=1 // pred_check_branch
      %94 = sbr.rel (0) target = $region33
    $region32: #{tpu_custom_call.1} parent=1 // pred_region
      %95 = dma.done [#allocation3], 128
    $region33: #{tpu_custom_call.1} parent=1 // pred_fallthru
      _
    // Predicated region
    $region34: #{tpu_custom_call.1} parent=1 // pred_check
      _
    $region35: #{tpu_custom_call.1} parent=1 // pred_check_branch
      %97 = sbr.rel (0) target = $region37
    $region36: #{tpu_custom_call.1} parent=1 // pred_region
      %98 = dma.done [#allocation6], 512
    $region37: #{tpu_custom_call.1} parent=1 // pred_fallthru
      _
    // Predicated region
    $region38: #{tpu_custom_call.1} parent=1 // pred_check
      _
    $region39: #{tpu_custom_call.1} parent=1 // pred_check_branch
      %100 = sbr.rel (0) target = $region41
    $region40: #{tpu_custom_call.1} parent=1 // pred_region
      %101 = dma.done [#allocation6], 16
    $region41: #{tpu_custom_call.1} parent=1 // pred_fallthru
      _
    // Predicated region
    $region42: #{tpu_custom_call.1} parent=1 // pred_check
      _
    $region43: #{tpu_custom_call.1} parent=1 // pred_check_branch
      %103 = sbr.rel (0) target = $region45
    $region44: #{tpu_custom_call.1} parent=1 // pred_region
      %104 = dma.done [#allocation9], 1024
    $region45: #{tpu_custom_call.1} parent=1 // pred_fallthru
      _
    // Predicated region
    $region46: #{tpu_custom_call.1} parent=1 // pred_check
      _
    $region47: #{tpu_custom_call.1} parent=1 // pred_check_branch
      %106 = sbr.rel (0) target = $region49
    $region48: #{tpu_custom_call.1} parent=1 // pred_region
      %107 = dma.done [#allocation9], 16
    $region49: #{tpu_custom_call.1} parent=1 // pred_fallthru
      _
    // Predicated region
    $region50: #{tpu_custom_call.1} parent=1 // pred_check
      _
    $region51: #{tpu_custom_call.1} parent=1 // pred_check_branch
      %109 = sbr.rel (0) target = $region53
    $region52: #{tpu_custom_call.1} parent=1 // pred_region
      %110 = dma.done [#allocation12], 1024
    $region53: #{tpu_custom_call.1} parent=1 // pred_fallthru
      _
    // Predicated region
    $region54: #{tpu_custom_call.1} parent=1 // pred_check
      _
    $region55: #{tpu_custom_call.1} parent=1 // pred_check_branch
      %112 = sbr.rel (0) target = $region57
    $region56: #{tpu_custom_call.1} parent=1 // pred_region
      %113 = dma.done [#allocation12], 16
    $region57: #{tpu_custom_call.1} parent=1 // pred_fallthru
      _
    %v115 = vld [vmem:[#allocation2] sm:$0xff]
    %v116 = vpack.c.bf16 %v115, %v115
    %v117 = vld [vmem:[#allocation5] sm:$0xf]
    %v118 = vld [vmem:[#allocation5 + $0x4] sm:$0xf]
    %v119 = vld [vmem:[#allocation5 + $0x8] sm:$0xf]
    %v120 = vld [vmem:[#allocation5 + $0xc] sm:$0xf]
    %v121 = vld [vmem:[#allocation5 + $0x10] sm:$0xf]
    %v122 = vld [vmem:[#allocation5 + $0x14] sm:$0xf]
    %v123 = vld [vmem:[#allocation5 + $0x18] sm:$0xf]
    %v124 = vld [vmem:[#allocation5 + $0x1c] sm:$0xf]
    %v125 = vld [vmem:[#allocation7] sm:$0x1]
    %v127 = vlaneseq
    %v128 = vshrl.u32 %v127, 7
    %v129 = vsub.s32 0, %v128
    %v130 = vrot.slane %v125, %v129
    %v140 = vunpack.c.l.b16 %v117
    %v141 = vunpack.c.l.b16 %v118
    %v142 = vunpack.c.l.b16 %v119
    %v143 = vunpack.c.l.b16 %v120
    %v144 = vunpack.c.l.b16 %v121
    %v145 = vunpack.c.l.b16 %v122
    %v146 = vunpack.c.l.b16 %v123
    %v147 = vunpack.c.l.b16 %v124
    %v148 = vpack.c.b16 %v141, %v140
    %v149 = vpack.c.b16 %v143, %v142
    %v150 = vpack.c.b16 %v145, %v144
    %v151 = vpack.c.b16 %v147, %v146
    %vm156 = vcmask 523264
    %v158 = vsel %vm156, %v116, 0
    %160 = vmatprep.subr.bf16.mxu0 0
    %161 = vmatpush1.bf16.msra.mxu0 %v148
    %162 = vmatprep.subr.bf16.mxu0 0
    %163 = vmatpush1.bf16.msra.mxu0 %v149
    %164 = vmatprep.subr.bf16.mxu0 0
    %165 = vmatpush1.bf16.msra.mxu0 %v150
    %166 = vmatprep.subr.bf16.mxu0 0
    %167 = vmatpush1.bf16.msra.mxu0 %v151
    %168 = vmatprep.subr.bf16.mxu0 0
    %169 = vmatpush1.bf16.msra.mxu0 0
    %170 = vmatprep.subr.bf16.mxu0 0
    %171 = vmatpush1.bf16.msra.mxu0 0
    %172 = vmatprep.subr.bf16.mxu0 0
    %173 = vmatpush1.bf16.msra.mxu0 0
    %174 = vmatprep.subr.bf16.mxu0 0
    %175 = vmatpush1.bf16.msra.mxu0 0
    %176 = vmatprep.subr.bf16.mxu0 0
    %177 = vmatpush1.bf16.msra.mxu0 0
    %178 = vmatprep.subr.bf16.mxu0 0
    %179 = vmatpush1.bf16.msra.mxu0 0
    %180 = vmatprep.subr.bf16.mxu0 0
    %181 = vmatpush1.bf16.msra.mxu0 0
    %182 = vmatprep.subr.bf16.mxu0 0
    %183 = vmatpush1.bf16.msra.mxu0 0
    %184 = vmatprep.subr.bf16.mxu0 0
    %185 = vmatpush1.bf16.msra.mxu0 0
    %186 = vmatprep.subr.bf16.mxu0 0
    %187 = vmatpush1.bf16.msra.mxu0 0
    %188 = vmatprep.subr.bf16.mxu0 0
    %189 = vmatpush1.bf16.msra.mxu0 0
    %190 = vmatprep.subr.bf16.mxu0 0
    %191 = vmatpush1.bf16.msra.mxu0 0
    %192 = vmatprep.mubr.bf16.mxu0 0
    %193 = vmatmul.mubr.bf16.gmra.mrb[0].mxu0 %v158
    %v194 = vpop.f32.mrb[0].mxu0
    %v195 = vadd.f32 %v130, %v194
    %v196 = vpop.f32.mrb[0].mxu0
    %v197 = vpop.f32.mrb[0].mxu0
    %v198 = vpop.f32.mrb[0].mxu0
    %199 = vdwg.mxu0
    %v200 = vmax.f32 %v195, 0.0
    %v201 = vpack.c.bf16 %v200, %v200
    %v202 = vld [vmem:[#allocation8] sm:$0xf]
    %v203 = vld [vmem:[#allocation8 + $0x4] sm:$0xf]
    %v204 = vld [vmem:[#allocation8 + $0x8] sm:$0xf]
    %v205 = vld [vmem:[#allocation8 + $0xc] sm:$0xf]
    %v206 = vld [vmem:[#allocation8 + $0x10] sm:$0xf]
    %v207 = vld [vmem:[#allocation8 + $0x14] sm:$0xf]
    %v208 = vld [vmem:[#allocation8 + $0x18] sm:$0xf]
    %v209 = vld [vmem:[#allocation8 + $0x1c] sm:$0xf]
    %v210 = vld [vmem:[#allocation8 + $0x20] sm:$0xf]
    %v211 = vld [vmem:[#allocation8 + $0x24] sm:$0xf]
    %v212 = vld [vmem:[#allocation8 + $0x28] sm:$0xf]
    %v213 = vld [vmem:[#allocation8 + $0x2c] sm:$0xf]
    %v214 = vld [vmem:[#allocation8 + $0x30] sm:$0xf]
    %v215 = vld [vmem:[#allocation8 + $0x34] sm:$0xf]
    %v216 = vld [vmem:[#allocation8 + $0x38] sm:$0xf]
    %v217 = vld [vmem:[#allocation8 + $0x3c] sm:$0xf]
    %v218 = vld [vmem:[#allocation10] sm:$0x1]
    %v220 = vlaneseq
    %v221 = vshrl.u32 %v220, 7
    %v222 = vsub.s32 0, %v221
    %v223 = vrot.slane %v218, %v222
    %v241 = vunpack.c.l.b16 %v202
    %v242 = vunpack.c.l.b16 %v203
    %v243 = vunpack.c.l.b16 %v204
    %v244 = vunpack.c.l.b16 %v205
    %v245 = vunpack.c.l.b16 %v206
    %v246 = vunpack.c.l.b16 %v207
    %v247 = vunpack.c.l.b16 %v208
    %v248 = vunpack.c.l.b16 %v209
    %v249 = vunpack.c.l.b16 %v210
    %v250 = vunpack.c.l.b16 %v211
    %v251 = vunpack.c.l.b16 %v212
    %v252 = vunpack.c.l.b16 %v213
    %v253 = vunpack.c.l.b16 %v214
    %v254 = vunpack.c.l.b16 %v215
    %v255 = vunpack.c.l.b16 %v216
    %v256 = vunpack.c.l.b16 %v217
    %v257 = vpack.c.b16 %v242, %v241
    %v258 = vpack.c.b16 %v244, %v243
    %v259 = vpack.c.b16 %v246, %v245
    %v260 = vpack.c.b16 %v248, %v247
    %v261 = vpack.c.b16 %v250, %v249
    %v262 = vpack.c.b16 %v252, %v251
    %v263 = vpack.c.b16 %v254, %v253
    %v264 = vpack.c.b16 %v256, %v255
    %273 = vmatprep.subr.bf16.mxu0 0
    %274 = vmatpush1.bf16.msra.mxu0 %v257
    %275 = vmatprep.subr.bf16.mxu0 0
    %276 = vmatpush1.bf16.msra.mxu0 %v258
    %277 = vmatprep.subr.bf16.mxu0 0
    %278 = vmatpush1.bf16.msra.mxu0 %v259
    %279 = vmatprep.subr.bf16.mxu0 0
    %280 = vmatpush1.bf16.msra.mxu0 %v260
    %281 = vmatprep.subr.bf16.mxu0 0
    %282 = vmatpush1.bf16.msra.mxu0 %v261
    %283 = vmatprep.subr.bf16.mxu0 0
    %284 = vmatpush1.bf16.msra.mxu0 %v262
    %285 = vmatprep.subr.bf16.mxu0 0
    %286 = vmatpush1.bf16.msra.mxu0 %v263
    %287 = vmatprep.subr.bf16.mxu0 0
    %288 = vmatpush1.bf16.msra.mxu0 %v264
    %289 = vmatprep.subr.bf16.mxu0 0
    %290 = vmatpush1.bf16.msra.mxu0 0
    %291 = vmatprep.subr.bf16.mxu0 0
    %292 = vmatpush1.bf16.msra.mxu0 0
    %293 = vmatprep.subr.bf16.mxu0 0
    %294 = vmatpush1.bf16.msra.mxu0 0
    %295 = vmatprep.subr.bf16.mxu0 0
    %296 = vmatpush1.bf16.msra.mxu0 0
    %297 = vmatprep.subr.bf16.mxu0 0
    %298 = vmatpush1.bf16.msra.mxu0 0
    %299 = vmatprep.subr.bf16.mxu0 0
    %300 = vmatpush1.bf16.msra.mxu0 0
    %301 = vmatprep.subr.bf16.mxu0 0
    %302 = vmatpush1.bf16.msra.mxu0 0
    %303 = vmatprep.subr.bf16.mxu0 0
    %304 = vmatpush1.bf16.msra.mxu0 0
    %305 = vmatprep.mubr.bf16.mxu0 0
    %306 = vmatmul.mubr.bf16.gmra.mrb[0].mxu0 %v201
    %v307 = vpop.f32.mrb[0].mxu0
    %v308 = vadd.f32 %v223, %v307
    %v309 = vpop.f32.mrb[0].mxu0
    %v310 = vpop.f32.mrb[0].mxu0
    %v311 = vpop.f32.mrb[0].mxu0
    %312 = vdwg.mxu0
    %v313 = vmax.f32 %v308, 0.0
    %v314 = vpack.c.bf16 %v313, %v313
    %v315 = vld [vmem:[#allocation11] sm:$0xf]
    %v316 = vld [vmem:[#allocation11 + $0x4] sm:$0xf]
    %v317 = vld [vmem:[#allocation11 + $0x8] sm:$0xf]
    %v318 = vld [vmem:[#allocation11 + $0xc] sm:$0xf]
    %v319 = vld [vmem:[#allocation11 + $0x10] sm:$0xf]
    %v320 = vld [vmem:[#allocation11 + $0x14] sm:$0xf]
    %v321 = vld [vmem:[#allocation11 + $0x18] sm:$0xf]
    %v322 = vld [vmem:[#allocation11 + $0x1c] sm:$0xf]
    %v323 = vld [vmem:[#allocation11 + $0x20] sm:$0xf]
    %v324 = vld [vmem:[#allocation11 + $0x24] sm:$0xf]
    %v325 = vld [vmem:[#allocation11 + $0x28] sm:$0xf]
    %v326 = vld [vmem:[#allocation11 + $0x2c] sm:$0xf]
    %v327 = vld [vmem:[#allocation11 + $0x30] sm:$0xf]
    %v328 = vld [vmem:[#allocation11 + $0x34] sm:$0xf]
    %v329 = vld [vmem:[#allocation11 + $0x38] sm:$0xf]
    %v330 = vld [vmem:[#allocation11 + $0x3c] sm:$0xf]
    %v331 = vld [vmem:[#allocation13] sm:$0x1]
    %v333 = vlaneseq
    %v334 = vshrl.u32 %v333, 7
    %v335 = vsub.s32 0, %v334
    %v336 = vrot.slane %v331, %v335
    %v354 = vunpack.c.l.b16 %v315
    %v355 = vunpack.c.l.b16 %v316
    %v356 = vunpack.c.l.b16 %v317
    %v357 = vunpack.c.l.b16 %v318
    %v358 = vunpack.c.l.b16 %v319
    %v359 = vunpack.c.l.b16 %v320
    %v360 = vunpack.c.l.b16 %v321
    %v361 = vunpack.c.l.b16 %v322
    %v362 = vunpack.c.l.b16 %v323
    %v363 = vunpack.c.l.b16 %v324
    %v364 = vunpack.c.l.b16 %v325
    %v365 = vunpack.c.l.b16 %v326
    %v366 = vunpack.c.l.b16 %v327
    %v367 = vunpack.c.l.b16 %v328
    %v368 = vunpack.c.l.b16 %v329
    %v369 = vunpack.c.l.b16 %v330
    %v370 = vpack.c.b16 %v355, %v354
    %v371 = vpack.c.b16 %v357, %v356
    %v372 = vpack.c.b16 %v359, %v358
    %v373 = vpack.c.b16 %v361, %v360
    %v374 = vpack.c.b16 %v363, %v362
    %v375 = vpack.c.b16 %v365, %v364
    %v376 = vpack.c.b16 %v367, %v366
    %v377 = vpack.c.b16 %v369, %v368
    %386 = vmatprep.subr.bf16.mxu0 0
    %387 = vmatpush1.bf16.msra.mxu0 %v370
    %388 = vmatprep.subr.bf16.mxu0 0
    %389 = vmatpush1.bf16.msra.mxu0 %v371
    %390 = vmatprep.subr.bf16.mxu0 0
    %391 = vmatpush1.bf16.msra.mxu0 %v372
    %392 = vmatprep.subr.bf16.mxu0 0
    %393 = vmatpush1.bf16.msra.mxu0 %v373
    %394 = vmatprep.subr.bf16.mxu0 0
    %395 = vmatpush1.bf16.msra.mxu0 %v374
    %396 = vmatprep.subr.bf16.mxu0 0
    %397 = vmatpush1.bf16.msra.mxu0 %v375
    %398 = vmatprep.subr.bf16.mxu0 0
    %399 = vmatpush1.bf16.msra.mxu0 %v376
    %400 = vmatprep.subr.bf16.mxu0 0
    %401 = vmatpush1.bf16.msra.mxu0 %v377
    %402 = vmatprep.subr.bf16.mxu0 0
    %403 = vmatpush1.bf16.msra.mxu0 0
    %404 = vmatprep.subr.bf16.mxu0 0
    %405 = vmatpush1.bf16.msra.mxu0 0
    %406 = vmatprep.subr.bf16.mxu0 0
    %407 = vmatpush1.bf16.msra.mxu0 0
    %408 = vmatprep.subr.bf16.mxu0 0
    %409 = vmatpush1.bf16.msra.mxu0 0
    %410 = vmatprep.subr.bf16.mxu0 0
    %411 = vmatpush1.bf16.msra.mxu0 0
    %412 = vmatprep.subr.bf16.mxu0 0
    %413 = vmatpush1.bf16.msra.mxu0 0
    %414 = vmatprep.subr.bf16.mxu0 0
    %415 = vmatpush1.bf16.msra.mxu0 0
    %416 = vmatprep.subr.bf16.mxu0 0
    %417 = vmatpush1.bf16.msra.mxu0 0
    %418 = vmatprep.mubr.bf16.mxu0 0
    %419 = vmatmul.mubr.bf16.gmra.mrb[0].mxu0 %v314
    %v420 = vpop.f32.mrb[0].mxu0
    %v421 = vadd.f32 %v336, %v420
    %v422 = vpop.f32.mrb[0].mxu0
    %v423 = vpop.f32.mrb[0].mxu0
    %v424 = vpop.f32.mrb[0].mxu0
    %425 = vdwg.mxu0
    %426 = vmax.xlane.f32.xlu0 %v421
    %v427 = vpop.xlane.xlu0 %426
    %v428 = vsub.f32 %v421, %v427
    %v429 = vmul.f32 %v428, 1.442695
    %v430 = vpow.pop %v429
    %431 = vadd.xlane.f32.xlu0 %v430
    %v432 = vpop.xlane.xlu0 %431
    %v433 = vrcp.pop %v432
    %v434 = vmul.f32 %v430, %v433
    %435 = vst [vmem:[#allocation14] sm:$0xff] %v434
    // Predicated region
    $region58: #{tpu_custom_call.1} parent=1 // pred_check
      _
    $region59: #{tpu_custom_call.1} parent=1 // pred_check_branch
      %437 = sbr.rel (0) target = $region61
    $region60: #{tpu_custom_call.1} parent=1 // pred_region
      %s439 = ssub.s32 128, 128
      %440 = vsyncadd [#allocation4], %s439
      %s442 = sshll.u32 [#allocation14], 4
      %s443 = int_to_ptr.vmem [resolvable:$true] %s442
      %445 = dma.vmem_to_hbm [thread:$0]  %s443, 128, %s7, [#allocation4]
    $region61: #{tpu_custom_call.1} parent=1 // pred_fallthru
      _
    // Predicated region
    $region62: #{tpu_custom_call.1} parent=1 // pred_check
      _
    $region63: #{tpu_custom_call.1} parent=1 // pred_check_branch
      %447 = sbr.rel (0) target = $region65
    $region64: #{tpu_custom_call.1} parent=1 // pred_region
      %448 = dma.done [#allocation4], 128
    $region65: #{tpu_custom_call.1} parent=1 // pred_fallthru
      _
    %449 = vsyncpa [#allocation3], 1
    %450 = vsyncpa [#allocation6], 1
    %451 = vsyncpa [#allocation9], 1
    %452 = vsyncpa [#allocation12], 1
    %453 = vsyncpa [#allocation4], 1

</llo_original>
